<compile_context>
chip_gen: v7x
topology: tpu7x:2x2x1
jax: 0.10.0
libtpu: 0.0.40
codegen_flags: <defaults>
</compile_context>

<pallas_src>
import functools

import jax
import jax.numpy as jnp
from jax.experimental import pallas as pl
from jax.experimental.pallas import tpu as pltpu


def _round_up(v, m):
    return (v + m - 1) // m * m


def _cdiv(a, b):
    return (a + b - 1) // b


def _ls_ce_kernel(x_ref, t_ref, out_ref, *, smoothing, n_valid, tile_n, chunk_c):
    """One row tile: writes the (masked) sum of per-row losses as a partial.

    x_ref:   (tile_n, C) logits in VMEM (native dtype; chunks upcast locally)
    t_ref:   (tile_n, 1) int32 targets in VMEM
    out_ref: (1, 8, 128) f32 lane-dense partial-sum slab (scalar broadcast)
    """
    c = x_ref.shape[-1]
    confidence = 1.0 - smoothing
    w_other = smoothing / c
    w_target = confidence + w_other

    t = t_ref[...]                                        # (tile_n, 1) int32

    def chunk_update(col0, width, carry):
        m, s, a = carry
        xc = x_ref[:, pl.ds(col0, width)]                 # (tile_n, width) native
        col = col0 + jax.lax.broadcasted_iota(jnp.int32, (tile_n, width), 1)

        # Running max (native-dtype max is exact; bf16-friendly on v6e/v7x).
        cmax = jnp.max(xc, axis=-1, keepdims=True).astype(jnp.float32)
        m_new = jnp.maximum(m, cmax)

        # Online sum-of-exp. exp is evaluated in f32 for accuracy/portability
        # (the f32 temp is only (tile_n, width), not the whole tile).
        p = jnp.exp(xc.astype(jnp.float32) - m_new)
        s = s * jnp.exp(m - m_new) + jnp.sum(p, axis=-1, keepdims=True)

        # Fused weighted sum: conf*x[t] + smoothing*mean(x) == sum(x * w).
        w = jnp.where(col == t, w_target, w_other).astype(xc.dtype)
        a = a + jnp.sum((xc * w).astype(jnp.float32), axis=-1, keepdims=True)
        return m_new, s, a

    carry = (jnp.full((tile_n, 1), -jnp.inf, jnp.float32),
             jnp.zeros((tile_n, 1), jnp.float32),
             jnp.zeros((tile_n, 1), jnp.float32))

    n_full = c // chunk_c
    rem = c - n_full * chunk_c

    if n_full > 0:
        if n_full <= 4:
            # Few chunks: unroll with static (cheap, aligned) slices.
            for j in range(n_full):
                carry = chunk_update(j * chunk_c, chunk_c, carry)
        else:
            def body(j, inner_carry):
                col0 = pl.multiple_of(j * chunk_c, chunk_c)
                return chunk_update(col0, chunk_c, inner_carry)
            carry = jax.lax.fori_loop(0, n_full, body, carry)
    if rem > 0:
        carry = chunk_update(n_full * chunk_c, rem, carry)

    m, s, a = carry
    loss_row = m + jnp.log(s) - a                         # (tile_n, 1)

    # Mask rows past the true N (ragged last row tile; no wrapper-side pad).
    row0 = pl.program_id(0) * tile_n
    rows = row0 + jax.lax.broadcasted_iota(jnp.int32, (tile_n, 1), 0)
    loss_row = jnp.where(rows < n_valid, loss_row, 0.0)

    partial = jnp.sum(loss_row, axis=0, keepdims=True)    # (1, 1)
    out_ref[...] = jnp.broadcast_to(partial.reshape(1, 1, 1), out_ref.shape)


def label_smoothing_cross_entropy(x, target, smoothing=0.1, block_rows=512):
    """Pallas-backed equivalent of LabelSmoothingCrossEntropy.forward."""
    assert smoothing < 1.0
    n, c = x.shape
    itemsize = jnp.dtype(x.dtype).itemsize

    # ---- generation-aware VMEM budget --------------------------------------
    try:
        vmem_cap = int(pltpu.get_tpu_info().vmem_capacity_bytes)
    except Exception:
        vmem_cap = 64 * 1024 * 1024          # conservative fallback (v7x per-TC)
    vmem_limit = int(min((vmem_cap * 3) // 4, 100 * 1024 * 1024))
    per_buf_budget = vmem_limit // 4         # x is double-buffered -> 2 bufs <= limit/2

    # ---- row tile -----------------------------------------------------------
    bytes_per_row = max(c * itemsize, 1)
    max_rows_by_vmem = max(8, per_buf_budget // bytes_per_row)
    tn = min(block_rows, max_rows_by_vmem, _round_up(n, 8))
    tn = max(8, (tn // 8) * 8)

    num_tiles = _cdiv(n, tn)
    # v7x megacore balance: prefer an even number of row tiles (free on v5e/v6e).
    if num_tiles % 2 == 1 and n > 8:
        cand = max(8, _round_up(_cdiv(n, num_tiles + 1), 8))
        if (cand < tn or num_tiles == 1) and _cdiv(n, cand) % 2 == 0:
            tn = cand
            num_tiles = _cdiv(n, tn)

    # Class-chunk width for the in-kernel online reduction: multiple of 128
    # lanes, sized so per-chunk f32 temps stay around <= 1 MiB.
    cc = max(128, min(1024, ((1 << 20) // (tn * 4)) // 128 * 128))
    # TODO(synk): on v7x, feeding jnp.exp with bf16 (native EUP) would roughly
    # double transcendental throughput for bf16 inputs; kept f32 for portability.

    t2 = target.reshape(n, 1).astype(jnp.int32)

    kernel = functools.partial(
        _ls_ce_kernel, smoothing=float(smoothing), n_valid=n, tile_n=tn,
        chunk_c=cc)

    cost = pl.CostEstimate(
        flops=6 * n * c,
        transcendentals=n * c,
        bytes_accessed=n * c * itemsize + n * 4 + num_tiles * 8 * 128 * 4,
    )

    partials = pl.pallas_call(
        kernel,
        out_shape=jax.ShapeDtypeStruct((num_tiles, 8, 128), jnp.float32),
        grid_spec=pltpu.PrefetchScalarGridSpec(
            num_scalar_prefetch=0,
            grid=(num_tiles,),
            in_specs=[
                pl.BlockSpec((tn, c), lambda i: (i, 0)),
                pl.BlockSpec((tn, 1), lambda i: (i, 0)),
            ],
            out_specs=pl.BlockSpec((1, 8, 128), lambda i: (i, 0, 0)),
        ),
        compiler_params=pltpu.CompilerParams(
            dimension_semantics=("parallel",),
            vmem_limit_bytes=vmem_limit,
        ),
        cost_estimate=cost,
    )(x, t2)

    # Each tile wrote its scalar partial broadcast over the (8, 128) slab.
    total = jnp.sum(partials[:, 0, 0])
    return total / jnp.float32(n)


def _reference(x, target, smoothing=0.1):
    confidence = 1.0 - smoothing
    logprobs = jax.nn.log_softmax(x.astype(jnp.float32), axis=-1)
    nll = -jnp.take_along_axis(
        logprobs, target[:, None].astype(jnp.int32), axis=-1)[:, 0]
    smooth = -jnp.mean(logprobs, axis=-1)
    return jnp.mean(confidence * nll + smoothing * smooth)


if __name__ == "__main__":
    key = jax.random.PRNGKey(0)
    kx, kt = jax.random.split(key)

    # Primary small check (matches the module's expected (N, C) logits shape).
    N, C = 8, 32
    x = jax.random.normal(kx, (N, C), dtype=jnp.float32)
    target = jax.random.randint(kt, (N,), 0, C, dtype=jnp.int32)

    loss = jax.block_until_ready(
        label_smoothing_cross_entropy(x, target, smoothing=0.1))
    ref = _reference(x, target, smoothing=0.1)
    assert jnp.allclose(loss, ref, rtol=1e-5, atol=1e-5), (loss, ref)

    # Second check: multi-tile row grid + ragged last tile handled purely by
    # the in-kernel row mask (no padding), with a non-128-multiple C.
    N2, C2 = 37, 160
    kx2, kt2 = jax.random.split(kt)
    x2 = jax.random.normal(kx2, (N2, C2), dtype=jnp.float32)
    t2 = jax.random.randint(kt2, (N2,), 0, C2, dtype=jnp.int32)
    loss2 = jax.block_until_ready(
        label_smoothing_cross_entropy(x2, t2, smoothing=0.1, block_rows=16))
    ref2 = _reference(x2, t2, smoothing=0.1)
    assert jnp.allclose(loss2, ref2, rtol=1e-4, atol=1e-4), (loss2, ref2)

    # Third check: bf16 logits (native-dtype max/select/mul, f32 exp/accum).
    x2_bf16 = x2.astype(jnp.bfloat16)
    loss3 = jax.block_until_ready(
        label_smoothing_cross_entropy(x2_bf16, t2, smoothing=0.1))
    ref3 = _reference(x2_bf16.astype(jnp.float32), t2, smoothing=0.1)
    assert jnp.allclose(loss3, ref3, rtol=2e-2, atol=2e-2), (loss3, ref3)

    print("KERNEL_OK")
</pallas_src>

<mosaic_0001>
module attributes {stable_mosaic.version = 11 : i64} {
  func.func @_ls_ce_kernel(%arg0: i32, %arg1: memref<8x32xf32, #tpu.memory_space<vmem>>, %arg2: memref<8x1xi32, #tpu.memory_space<vmem>>, %arg3: memref<1x8x128xf32, #tpu.memory_space<vmem>>) attributes {dimension_semantics = [#tpu.dimension_semantics<parallel>], iteration_bounds = array<i64: 1>, scalar_prefetch = 0 : i64, scratch_operands = 0 : i64, tpu.core_type = #tpu.core_type<tc>, window_params = [{transform_indices = @transform_0, window_bounds = array<i64: 8, 32>}, {transform_indices = @transform_1, window_bounds = array<i64: 8, 1>}, {transform_indices = @transform_2, window_bounds = array<i64: 1, 8, 128>}]} {
    %c0 = arith.constant 0 : index
    %c0_0 = arith.constant 0 : index
    %0 = vector.load %arg2[%c0, %c0_0] : memref<8x1xi32, #tpu.memory_space<vmem>>, vector<8x1xi32>
    %cst = arith.constant 0xFF800000 : f32
    %1 = vector.broadcast %cst : f32 to vector<8x1xf32>
    %cst_1 = arith.constant 0.000000e+00 : f32
    %2 = vector.broadcast %cst_1 : f32 to vector<8x1xf32>
    %cst_2 = arith.constant 0.000000e+00 : f32
    %3 = vector.broadcast %cst_2 : f32 to vector<8x1xf32>
    %c0_3 = arith.constant 0 : index
    %c0_4 = arith.constant 0 : index
    %4 = vector.load %arg1[%c0_3, %c0_4] : memref<8x32xf32, #tpu.memory_space<vmem>>, vector<8x32xf32>
    %5 = tpu.iota {dimensions = array<i32: 1>} : vector<8x32xi32>
    %c0_i32 = arith.constant 0 : i32
    %6 = vector.broadcast %c0_i32 : i32 to vector<8x32xi32>
    %7 = arith.addi %6, %5 : vector<8x32xi32>
    %cst_5 = arith.constant dense<0xFF800000> : vector<8xf32>
    %8 = vector.multi_reduction <maximumf>, %4, %cst_5 [1] : vector<8x32xf32> to vector<8xf32>
    %9 = vector.shape_cast %8 : vector<8xf32> to vector<8x1xf32>
    %10 = arith.maximumf %1, %9 : vector<8x1xf32>
    %11 = vector.broadcast %10 : vector<8x1xf32> to vector<8x32xf32>
    %12 = arith.subf %4, %11 : vector<8x32xf32>
    %13 = math.exp %12 : vector<8x32xf32>
    %14 = arith.subf %1, %10 : vector<8x1xf32>
    %15 = math.exp %14 : vector<8x1xf32>
    %16 = arith.mulf %2, %15 : vector<8x1xf32>
    %cst_6 = arith.constant dense<0.000000e+00> : vector<8xf32>
    %17 = vector.multi_reduction <add>, %13, %cst_6 [1] : vector<8x32xf32> to vector<8xf32>
    %18 = vector.shape_cast %17 : vector<8xf32> to vector<8x1xf32>
    %19 = arith.addf %16, %18 : vector<8x1xf32>
    %20 = vector.broadcast %0 : vector<8x1xi32> to vector<8x32xi32>
    %21 = arith.cmpi eq, %7, %20 : vector<8x32xi32>
    %cst_7 = arith.constant 0.903124988 : f32
    %cst_8 = arith.constant 3.125000e-03 : f32
    %22 = vector.broadcast %cst_7 : f32 to vector<8x32xf32>
    %23 = vector.broadcast %cst_8 : f32 to vector<8x32xf32>
    %24 = arith.select %21, %22, %23 : vector<8x32xi1>, vector<8x32xf32>
    %25 = arith.mulf %4, %24 : vector<8x32xf32>
    %cst_9 = arith.constant dense<0.000000e+00> : vector<8xf32>
    %26 = vector.multi_reduction <add>, %25, %cst_9 [1] : vector<8x32xf32> to vector<8xf32>
    %27 = vector.shape_cast %26 : vector<8xf32> to vector<8x1xf32>
    %28 = arith.addf %3, %27 : vector<8x1xf32>
    %29 = math.log %19 : vector<8x1xf32>
    %30 = arith.addf %10, %29 : vector<8x1xf32>
    %31 = arith.subf %30, %28 : vector<8x1xf32>
    %c8_i32 = arith.constant 8 : i32
    %32 = arith.muli %arg0, %c8_i32 : i32
    %33 = tpu.iota {dimensions = array<i32: 0>} : vector<8x1xi32>
    %34 = vector.broadcast %32 : i32 to vector<8x1xi32>
    %35 = arith.addi %34, %33 : vector<8x1xi32>
    %c8_i32_10 = arith.constant 8 : i32
    %36 = vector.broadcast %c8_i32_10 : i32 to vector<8x1xi32>
    %37 = arith.cmpi slt, %35, %36 : vector<8x1xi32>
    %cst_11 = arith.constant 0.000000e+00 : f32
    %38 = vector.broadcast %cst_11 : f32 to vector<8x1xf32>
    %39 = arith.select %37, %31, %38 : vector<8x1xi1>, vector<8x1xf32>
    %cst_12 = arith.constant dense<0.000000e+00> : vector<1xf32>
    %40 = vector.multi_reduction <add>, %39, %cst_12 [0] : vector<8x1xf32> to vector<1xf32>
    %41 = vector.shape_cast %40 : vector<1xf32> to vector<1x1xf32>
    %42 = vector.shape_cast %41 : vector<1x1xf32> to vector<1x1x1xf32>
    %43 = vector.shape_cast %42 : vector<1x1x1xf32> to vector<1x1x1xf32>
    %44 = vector.broadcast %43 : vector<1x1x1xf32> to vector<1x8x128xf32>
    %c0_13 = arith.constant 0 : index
    %c0_14 = arith.constant 0 : index
    %c0_15 = arith.constant 0 : index
    %45 = vector.load %arg3[%c0_13, %c0_14, %c0_15] : memref<1x8x128xf32, #tpu.memory_space<vmem>>, vector<1x8x128xf32>
    tpu.vector_store %arg3[%c0_13, %c0_14, %c0_15], %44 {strides = array<i32>} : memref<1x8x128xf32, #tpu.memory_space<vmem>>, vector<1x8x128xf32>,
    return
  }
  func.func @transform_0(%arg0: i32) -> (i32, i32) {
    %c0_i32 = arith.constant 0 : i32
    %c0_i32_0 = arith.constant 0 : i32
    return %arg0, %c0_i32 : i32, i32
  }
  func.func @transform_1(%arg0: i32) -> (i32, i32) {
    %c0_i32 = arith.constant 0 : i32
    %c0_i32_0 = arith.constant 0 : i32
    return %arg0, %c0_i32 : i32, i32
  }
  func.func @transform_2(%arg0: i32) -> (i32, i32, i32) {
    %c0_i32 = arith.constant 0 : i32
    %c0_i32_0 = arith.constant 0 : i32
    %c0_i32_1 = arith.constant 0 : i32
    return %arg0, %c0_i32, %c0_i32_0 : i32, i32, i32
  }
}

</mosaic_0001>

<llo_original>
// kernel: tpu_custom_call.1
$region0: #{tpu_custom_call.1}
  #allocation0 [shape = 'u32[]', space=smem, size = 0x4, offset = 0x4, fixed_abs, tag = 'smem constant byte address 0x4 - core index']
  #allocation1 [shape = 'u32[144,128]{1,0:T(1,128)}', space=vmem, size = 0x12000, scoped, tag = 'internal scratch']
  %s0 = inlined_call_operand.vmem [shape: f32[8,32], index: 0, kind: input, shape index: {}]
  %s1 = inlined_call_operand.vmem [shape: s32[8,1], index: 1, kind: input, shape index: {}]
  %s2 = inlined_call_operand.hbm [shape: f32[1,8,128], index: 2, kind: output, shape index: {}]
  %s3 = sld [smem:[#allocation0]]
  $region18: #{tpu_custom_call.1} parent=0
    _
  %s5 = ssub.s32 1, %s3
  %s6 = scalar_select 0, %s5, %s3
  $region1: #{tpu_custom_call.1} parent=0
    #allocation2 [shape = 'u8[4096]{0}', space=vmem, size = 0x1000, scoped, tag = 'output window, operand 0, single buffered']
    #allocation3 [shape = 's32[1]{0}', space=sflag, size = 0x4, scoped, tag = 'scoped memory for tpu_custom_call.1']
    %7 = vsyncpa [#allocation3], 0
    // Predicated region
    $region2: #{tpu_custom_call.1} parent=1 // pred_check
      _
    $region3: #{tpu_custom_call.1} parent=1 // pred_check_branch
      %9 = sbr.rel (0) target = $region5
    $region4: #{tpu_custom_call.1} parent=1 // pred_region
      _
    $region5: #{tpu_custom_call.1} parent=1 // pred_fallthru
      _
    // Predicated region
    $region6: #{tpu_custom_call.1} parent=1 // pred_check
      _
    $region7: #{tpu_custom_call.1} parent=1 // pred_check_branch
      %11 = sbr.rel (0) target = $region9
    $region8: #{tpu_custom_call.1} parent=1 // pred_region
      _
    $region9: #{tpu_custom_call.1} parent=1 // pred_fallthru
      _
    %v12 = vld [vmem:[%s1] sm:$0xff]
    %v13 = vld [vmem:[%s0] sm:$0xff]
    %v14 = vlaneseq
    %v15 = vand.u32 %v14, 127
    %vm16 = vcmask 261120
    %v17 = vsel %vm16, %v13, -inf
    %18 = vmax.xlane.f32.xlu0 %v17
    %v19 = vpop.xlane.xlu0 %18
    %v20 = vsub.f32 %v13, %v19
    %v21 = vmul.f32 %v20, 1.442695
    %v22 = vpow.pop %v21
    %v23 = vsub.f32 -inf, %v19
    %v24 = vmul.f32 %v23, 1.442695
    %v25 = vpow.pop %v24
    %v26 = vmul.f32 %v25, 0.0
    %v27 = vsel %vm16, %v22, 0.0
    %28 = vadd.xlane.f32.xlu0 %v27
    %v29 = vpop.xlane.xlu0 %28
    %v30 = vadd.f32 %v26, %v29
    %31 = vset.pattern.permute.xlu0 0
    %32 = vperm.xlu0 %31, %v12
    %v33 = vpop.permute.xlu0 %32
    %vm34 = vcmp.eq.s32.totalorder %v15, %v33
    %v35 = vsel %vm34, 0.903125, 0.003125
    %v36 = vmul.f32 %v13, %v35
    %v37 = vsel %vm16, %v36, 0.0
    %38 = vadd.xlane.f32.xlu0 %v37
    %v39 = vpop.xlane.xlu0 %38
    %v40 = vadd.f32 %v39, 0.0
    %v41 = vlog2.pop %v30
    %v42 = vmul.f32 %v41, 0.6931472
    %v43 = vadd.f32 %v19, %v42
    %v44 = vsub.f32 %v43, %v40
    %s45 = smul.u32 0, 8
    %v46 = vlaneseq
    %v47 = vshrl.u32 %v46, 7
    %v48 = vstv %s45
    %v49 = vadd.s32 %v48, %v47
    %vm50 = vcmp.lt.s32.totalorder %v49, 8
    %v51 = vsel %vm50, %v44, 0.0
    %v52 = vrot.slane %v51, 4
    %v53 = vadd.f32 %v51, %v52
    %v54 = vrot.slane %v53, 2
    %v55 = vadd.f32 %v53, %v54
    %v56 = vrot.slane %v55, 1
    %v57 = vadd.f32 %v55, %v56
    %58 = vst [vmem:[#allocation2] sm:$0xff] %v57
    // Predicated region
    $region10: #{tpu_custom_call.1} parent=1 // pred_check
      _
    $region11: #{tpu_custom_call.1} parent=1 // pred_check_branch
      %60 = sbr.rel (0) target = $region13
    $region12: #{tpu_custom_call.1} parent=1 // pred_region
      %s62 = ssub.s32 128, 128
      %63 = vsyncadd [#allocation3], %s62
      %s65 = sshll.u32 [#allocation2], 4
      %s66 = int_to_ptr.vmem [resolvable:$true] %s65
      %68 = dma.vmem_to_hbm [thread:$0]  %s66, 128, %s2, [#allocation3]
    $region13: #{tpu_custom_call.1} parent=1 // pred_fallthru
      _
    // Predicated region
    $region14: #{tpu_custom_call.1} parent=1 // pred_check
      _
    $region15: #{tpu_custom_call.1} parent=1 // pred_check_branch
      %70 = sbr.rel (0) target = $region17
    $region16: #{tpu_custom_call.1} parent=1 // pred_region
      %71 = dma.done [#allocation3], 128
    $region17: #{tpu_custom_call.1} parent=1 // pred_fallthru
      _
    %72 = vsyncpa [#allocation3], 1

</llo_original>
